<compile_context>
chip_gen: v7x
topology: tpu7x:2x2x1
jax: 0.10.0
libtpu: 0.0.40
codegen_flags: <defaults>
</compile_context>

<pallas_src>
import functools

import jax
import jax.numpy as jnp
from jax.experimental import pallas as pl
from jax.experimental.pallas import tpu as pltpu

_HIDDEN = 128
_LANE = 128


def _round_up(x, m):
    return ((x + m - 1) // m) * m


def _dqn_mlp_kernel(x_ref, w1_ref, b1_ref, w2_ref, b2_ref, w3_ref, b3_ref, o_ref,
                    *, mxu_dtype):
    # In-kernel cast of the activation tile (x arrives f32; cast is fused here
    # instead of being a separate wrapper-side HBM pass).
    x = x_ref[...].astype(mxu_dtype)
    # Layer 0: Linear(state_size -> 128) + ReLU.  MXU in bf16 (or f32), accumulate f32.
    h1 = jnp.dot(x, w1_ref[...], preferred_element_type=jnp.float32)
    h1 = jnp.maximum(h1 + b1_ref[...], 0.0).astype(mxu_dtype)   # f32 VPU, bf16 spill
    # Layer 2: Linear(128 -> 128) + ReLU
    h2 = jnp.dot(h1, w2_ref[...], preferred_element_type=jnp.float32)
    h2 = jnp.maximum(h2 + b2_ref[...], 0.0).astype(mxu_dtype)
    # Layer 4: Linear(128 -> action_size_padded), no activation.  Lane-dense store.
    out = jnp.dot(h2, w3_ref[...], preferred_element_type=jnp.float32) + b3_ref[...]
    o_ref[...] = out.astype(o_ref.dtype)


def dqn_forward(x, params, *, tile_b=1024, use_bf16=True):
    """Full DQN MLP in one fused Pallas kernel.

    x:      [B, state_size] float32
    params: dict with w1 [S,128], b1 [1,128], w2 [128,128], b2 [1,128],
            w3 [128,A], b3 [1,A]   (weights already transposed vs. PyTorch)
    Returns [B, A] float32 Q-values (same semantics as the PyTorch module).
    """
    B, S = x.shape
    A = params["w3"].shape[1]

    mxu_dtype = jnp.bfloat16 if use_bf16 else jnp.float32
    out_dtype = jnp.bfloat16 if use_bf16 else jnp.float32
    w_bytes = 2 if use_bf16 else 4
    out_bytes = 2 if use_bf16 else 4

    # ---- pad action dim to a lane-dense 128 multiple (zeros are harmless) ----
    A_pad = _round_up(max(A, _LANE), _LANE)
    w3 = jnp.zeros((_HIDDEN, A_pad), jnp.float32).at[:, :A].set(params["w3"])
    b3 = jnp.zeros((1, A_pad), jnp.float32).at[:, :A].set(params["b3"])

    # ---- choose batch tiling: balance grid size vs. padding waste ----
    max_tile = max(8, (int(tile_b) // 8) * 8)
    grid_n = max(1, pl.cdiv(B, max_tile))
    if grid_n == 1 and B > 8:
        # Guarantee >=2 grid steps so the "parallel" axis can shard across both
        # TensorCores on v7x (and the x/out DMAs pipeline against compute).
        grid_n = 2
    tile = _round_up(pl.cdiv(B, grid_n), 8)
    B_pad = grid_n * tile
    if B_pad != B:
        # Pad rows with zeros (at most one tile's worth); garbage Q-values in the
        # padded rows are sliced off below.
        x = jnp.zeros((B_pad, S), x.dtype).at[:B, :].set(x)
    grid = (grid_n,)

    # ---- dtype handling: only the tiny weights are pre-cast; x stays f32 ----
    w1 = params["w1"].astype(mxu_dtype)
    w2 = params["w2"].astype(mxu_dtype)
    w3 = w3.astype(mxu_dtype)
    b1 = params["b1"].astype(jnp.float32)
    b2 = params["b2"].astype(jnp.float32)
    b3 = b3.astype(jnp.float32)

    # ---- VMEM budget: resident weights once, double-buffered x/out tiles, intermediates ----
    weights_bytes = (S * _HIDDEN + _HIDDEN * _HIDDEN + _HIDDEN * A_pad) * w_bytes \
                    + (_HIDDEN + _HIDDEN + A_pad) * 4
    x_tile_bytes = tile * S * 4                    # x enters the kernel in f32
    out_tile_bytes = tile * A_pad * out_bytes
    interm_bytes = 4 * tile * _HIDDEN * 4          # f32 accumulators (+slack for casts)
    budget = weights_bytes + 2 * x_tile_bytes + 2 * out_tile_bytes + interm_bytes
    vmem_limit = int(min(48 << 20, max(8 << 20, 2 * budget)))   # <=48 MiB: v7x-safe

    def resident(arr):  # full-array block, constant index_map -> stays in VMEM
        return pl.BlockSpec(arr.shape, lambda i: (0,) * arr.ndim)

    kernel = functools.partial(_dqn_mlp_kernel, mxu_dtype=mxu_dtype)

    out_pad = pl.pallas_call(
        kernel,
        out_shape=jax.ShapeDtypeStruct((B_pad, A_pad), out_dtype),
        grid_spec=pltpu.PrefetchScalarGridSpec(
            num_scalar_prefetch=0,
            grid=grid,
            in_specs=[
                pl.BlockSpec((tile, S), lambda i: (i, 0)),   # x: tiled over batch
                resident(w1), resident(b1),
                resident(w2), resident(b2),
                resident(w3), resident(b3),
            ],
            out_specs=pl.BlockSpec((tile, A_pad), lambda i: (i, 0)),
        ),
        compiler_params=pltpu.CompilerParams(
            dimension_semantics=("parallel",),
            vmem_limit_bytes=vmem_limit,
        ),
    )(x, w1, b1, w2, b2, w3, b3)

    # Slice off batch/action padding; final cast touches only the tiny [B, A] result.
    return out_pad[:B, :A].astype(jnp.float32)


def init_params(key, state_size, action_size, hidden=_HIDDEN):
    """Deterministic init mimicking PyTorch nn.Linear default
    (uniform in +/- 1/sqrt(fan_in)). Weights stored as [in, out]."""
    def linear(k, fan_in, fan_out):
        kw, kb = jax.random.split(k)
        bound = 1.0 / jnp.sqrt(fan_in)
        w = jax.random.uniform(kw, (fan_in, fan_out), jnp.float32, -bound, bound)
        b = jax.random.uniform(kb, (1, fan_out), jnp.float32, -bound, bound)
        return w, b

    k1, k2, k3 = jax.random.split(key, 3)
    w1, b1 = linear(k1, state_size, hidden)
    w2, b2 = linear(k2, hidden, hidden)
    w3, b3 = linear(k3, hidden, action_size)
    return {"w1": w1, "b1": b1, "w2": w2, "b2": b2, "w3": w3, "b3": b3}


def dqn_reference(x, params):
    h1 = jnp.maximum(x @ params["w1"] + params["b1"], 0.0)
    h2 = jnp.maximum(h1 @ params["w2"] + params["b2"], 0.0)
    return h2 @ params["w3"] + params["b3"]


if __name__ == "__main__":
    # Small shapes consistent with the module: state_size=16, action_size=4, batch=64.
    # B > 8 forces a 2-step grid, exercising pipelining / the parallel batch axis.
    batch, state_size, action_size = 64, 16, 4

    key = jax.random.PRNGKey(0)
    kx, kp = jax.random.split(key)
    x = jax.random.normal(kx, (batch, state_size), dtype=jnp.float32)
    params = init_params(kp, state_size, action_size)

    ref = jax.block_until_ready(dqn_reference(x, params))

    # f32 path: exact-ish match vs reference.
    out_f32 = jax.block_until_ready(dqn_forward(x, params, use_bf16=False))
    assert out_f32.shape == (batch, action_size)
    assert jnp.allclose(out_f32, ref, atol=1e-5, rtol=1e-5), "f32 Pallas kernel mismatch"

    # bf16-MXU path (default, the fast one on v6e/v7x): relaxed tolerance, f32 accumulation.
    out_bf16 = jax.block_until_ready(dqn_forward(x, params, use_bf16=True))
    assert out_bf16.shape == (batch, action_size)
    assert jnp.allclose(out_bf16, ref, atol=5e-2, rtol=5e-2), "bf16 Pallas kernel mismatch"

    print("KERNEL_OK")
</pallas_src>

<mosaic_0001>
module attributes {stable_mosaic.version = 11 : i64} {
  func.func @_dqn_mlp_kernel(%arg0: i32, %arg1: memref<32x16xf32, #tpu.memory_space<vmem>>, %arg2: memref<16x128xf32, #tpu.memory_space<vmem>>, %arg3: memref<1x128xf32, #tpu.memory_space<vmem>>, %arg4: memref<128x128xf32, #tpu.memory_space<vmem>>, %arg5: memref<1x128xf32, #tpu.memory_space<vmem>>, %arg6: memref<128x128xf32, #tpu.memory_space<vmem>>, %arg7: memref<1x128xf32, #tpu.memory_space<vmem>>, %arg8: memref<32x128xf32, #tpu.memory_space<vmem>>) attributes {dimension_semantics = [#tpu.dimension_semantics<parallel>], iteration_bounds = array<i64: 2>, scalar_prefetch = 0 : i64, scratch_operands = 0 : i64, tpu.core_type = #tpu.core_type<tc>, window_params = [{transform_indices = @transform_0, window_bounds = array<i64: 32, 16>}, {pipeline_mode = #tpu.pipeline_mode<synchronous>, transform_indices = @transform_1, window_bounds = array<i64: 16, 128>}, {pipeline_mode = #tpu.pipeline_mode<synchronous>, transform_indices = @transform_2, window_bounds = array<i64: 1, 128>}, {pipeline_mode = #tpu.pipeline_mode<synchronous>, transform_indices = @transform_3, window_bounds = array<i64: 128, 128>}, {pipeline_mode = #tpu.pipeline_mode<synchronous>, transform_indices = @transform_4, window_bounds = array<i64: 1, 128>}, {pipeline_mode = #tpu.pipeline_mode<synchronous>, transform_indices = @transform_5, window_bounds = array<i64: 128, 128>}, {pipeline_mode = #tpu.pipeline_mode<synchronous>, transform_indices = @transform_6, window_bounds = array<i64: 1, 128>}, {transform_indices = @transform_7, window_bounds = array<i64: 32, 128>}]} {
    %c0 = arith.constant 0 : index
    %c0_0 = arith.constant 0 : index
    %0 = vector.load %arg1[%c0, %c0_0] : memref<32x16xf32, #tpu.memory_space<vmem>>, vector<32x16xf32>
    %c0_1 = arith.constant 0 : index
    %c0_2 = arith.constant 0 : index
    %1 = vector.load %arg2[%c0_1, %c0_2] : memref<16x128xf32, #tpu.memory_space<vmem>>, vector<16x128xf32>
    %cst = arith.constant dense<0.000000e+00> : vector<32x128xf32>
    %2 = tpu.matmul %0, %1, %cst {dimension_numbers = #tpu.dot_dimension_numbers<[1], [0], [0], [1], [0, 0, 1, 1], [], []>} : vector<32x16xf32>, vector<16x128xf32>, vector<32x128xf32> -> vector<32x128xf32>
    %c0_3 = arith.constant 0 : index
    %c0_4 = arith.constant 0 : index
    %3 = vector.load %arg3[%c0_3, %c0_4] : memref<1x128xf32, #tpu.memory_space<vmem>>, vector<1x128xf32>
    %4 = vector.broadcast %3 : vector<1x128xf32> to vector<32x128xf32>
    %5 = arith.addf %2, %4 : vector<32x128xf32>
    %cst_5 = arith.constant 0.000000e+00 : f32
    %6 = vector.broadcast %cst_5 : f32 to vector<32x128xf32>
    %7 = arith.maximumf %5, %6 : vector<32x128xf32>
    %c0_6 = arith.constant 0 : index
    %c0_7 = arith.constant 0 : index
    %8 = vector.load %arg4[%c0_6, %c0_7] : memref<128x128xf32, #tpu.memory_space<vmem>>, vector<128x128xf32>
    %cst_8 = arith.constant dense<0.000000e+00> : vector<32x128xf32>
    %9 = tpu.matmul %7, %8, %cst_8 {dimension_numbers = #tpu.dot_dimension_numbers<[1], [0], [0], [1], [0, 0, 1, 1], [], []>} : vector<32x128xf32>, vector<128x128xf32>, vector<32x128xf32> -> vector<32x128xf32>
    %c0_9 = arith.constant 0 : index
    %c0_10 = arith.constant 0 : index
    %10 = vector.load %arg5[%c0_9, %c0_10] : memref<1x128xf32, #tpu.memory_space<vmem>>, vector<1x128xf32>
    %11 = vector.broadcast %10 : vector<1x128xf32> to vector<32x128xf32>
    %12 = arith.addf %9, %11 : vector<32x128xf32>
    %cst_11 = arith.constant 0.000000e+00 : f32
    %13 = vector.broadcast %cst_11 : f32 to vector<32x128xf32>
    %14 = arith.maximumf %12, %13 : vector<32x128xf32>
    %c0_12 = arith.constant 0 : index
    %c0_13 = arith.constant 0 : index
    %15 = vector.load %arg6[%c0_12, %c0_13] : memref<128x128xf32, #tpu.memory_space<vmem>>, vector<128x128xf32>
    %cst_14 = arith.constant dense<0.000000e+00> : vector<32x128xf32>
    %16 = tpu.matmul %14, %15, %cst_14 {dimension_numbers = #tpu.dot_dimension_numbers<[1], [0], [0], [1], [0, 0, 1, 1], [], []>} : vector<32x128xf32>, vector<128x128xf32>, vector<32x128xf32> -> vector<32x128xf32>
    %c0_15 = arith.constant 0 : index
    %c0_16 = arith.constant 0 : index
    %17 = vector.load %arg7[%c0_15, %c0_16] : memref<1x128xf32, #tpu.memory_space<vmem>>, vector<1x128xf32>
    %18 = vector.broadcast %17 : vector<1x128xf32> to vector<32x128xf32>
    %19 = arith.addf %16, %18 : vector<32x128xf32>
    %c0_17 = arith.constant 0 : index
    %c0_18 = arith.constant 0 : index
    %20 = vector.load %arg8[%c0_17, %c0_18] : memref<32x128xf32, #tpu.memory_space<vmem>>, vector<32x128xf32>
    tpu.vector_store %arg8[%c0_17, %c0_18], %19 {strides = array<i32>} : memref<32x128xf32, #tpu.memory_space<vmem>>, vector<32x128xf32>,
    return
  }
  func.func @transform_0(%arg0: i32) -> (i32, i32) {
    %c0_i32 = arith.constant 0 : i32
    %c0_i32_0 = arith.constant 0 : i32
    return %arg0, %c0_i32 : i32, i32
  }
  func.func @transform_1(%arg0: i32) -> (i32, i32) {
    %c0_i32 = arith.constant 0 : i32
    %c0_i32_0 = arith.constant 0 : i32
    %c0_i32_1 = arith.constant 0 : i32
    return %c0_i32, %c0_i32_0 : i32, i32
  }
  func.func @transform_2(%arg0: i32) -> (i32, i32) {
    %c0_i32 = arith.constant 0 : i32
    %c0_i32_0 = arith.constant 0 : i32
    %c0_i32_1 = arith.constant 0 : i32
    return %c0_i32, %c0_i32_0 : i32, i32
  }
  func.func @transform_3(%arg0: i32) -> (i32, i32) {
    %c0_i32 = arith.constant 0 : i32
    %c0_i32_0 = arith.constant 0 : i32
    %c0_i32_1 = arith.constant 0 : i32
    return %c0_i32, %c0_i32_0 : i32, i32
  }
  func.func @transform_4(%arg0: i32) -> (i32, i32) {
    %c0_i32 = arith.constant 0 : i32
    %c0_i32_0 = arith.constant 0 : i32
    %c0_i32_1 = arith.constant 0 : i32
    return %c0_i32, %c0_i32_0 : i32, i32
  }
  func.func @transform_5(%arg0: i32) -> (i32, i32) {
    %c0_i32 = arith.constant 0 : i32
    %c0_i32_0 = arith.constant 0 : i32
    %c0_i32_1 = arith.constant 0 : i32
    return %c0_i32, %c0_i32_0 : i32, i32
  }
  func.func @transform_6(%arg0: i32) -> (i32, i32) {
    %c0_i32 = arith.constant 0 : i32
    %c0_i32_0 = arith.constant 0 : i32
    %c0_i32_1 = arith.constant 0 : i32
    return %c0_i32, %c0_i32_0 : i32, i32
  }
  func.func @transform_7(%arg0: i32) -> (i32, i32) {
    %c0_i32 = arith.constant 0 : i32
    %c0_i32_0 = arith.constant 0 : i32
    return %arg0, %c0_i32 : i32, i32
  }
}

</mosaic_0001>

<llo_original>
// kernel: tpu_custom_call.1
$region0: #{tpu_custom_call.1}
  #allocation0 [shape = 'u32[]', space=smem, size = 0x4, offset = 0x4, fixed_abs, tag = 'smem constant byte address 0x4 - core index']
  #allocation1 [shape = 'u32[144,128]{1,0:T(1,128)}', space=vmem, size = 0x12000, scoped, tag = 'internal scratch']
  %s0 = inlined_call_operand.vmem [shape: f32[64,16], index: 0, kind: input, shape index: {}]
  %s1 = inlined_call_operand.vmem [shape: f32[16,128], index: 1, kind: input, shape index: {}]
  %s2 = inlined_call_operand.vmem [shape: f32[1,128], index: 2, kind: input, shape index: {}]
  %s3 = inlined_call_operand.hbm [shape: f32[128,128], index: 3, kind: input, shape index: {}]
  %s4 = inlined_call_operand.vmem [shape: f32[1,128], index: 4, kind: input, shape index: {}]
  %s5 = inlined_call_operand.hbm [shape: f32[128,128], index: 5, kind: input, shape index: {}]
  %s6 = inlined_call_operand.vmem [shape: f32[1,128], index: 6, kind: input, shape index: {}]
  %s7 = inlined_call_operand.hbm [shape: f32[64,128], index: 7, kind: output, shape index: {}]
  %s8 = sld [smem:[#allocation0]]
  $region69: #{tpu_custom_call.1} parent=0
    _
  %s10 = ssub.s32 1, %s8
  %s11 = scalar_select 0, %s10, %s8
  $region1: #{tpu_custom_call.1} parent=0
    #allocation2 [shape = 'u8[65536]{0}', space=vmem, size = 0x10000, scoped, tag = 'input window, operand 3, single buffered']
    #allocation3 [shape = 's32[2]{0}', space=sflag, size = 0x8, scoped, tag = 'scoped memory for tpu_custom_call.1']
    #allocation4 [shape = 's32[2]{0}', space=sflag, size = 0x8, scoped, tag = 'scoped memory for tpu_custom_call.1']
    #allocation5 [shape = 'u8[65536]{0}', space=vmem, size = 0x10000, scoped, tag = 'input window, operand 5, single buffered']
    #allocation6 [shape = 's32[1]{0}', space=sflag, size = 0x4, scoped, tag = 'scoped memory for tpu_custom_call.1']
    #allocation7 [shape = 'u8[32768]{0}', space=vmem, size = 0x8000, scoped, tag = 'output window, operand 0']
    %12 = vsyncpa [#allocation3], 0
    %13 = vsyncpa [#allocation6], 0
    %14 = vsyncpa [#allocation4], 0
    %s15 = scalar_lea.sflag [#allocation4], 1
    %16 = vsyncpa %s15, 0
    loop: start=0, step=1, limit=4
    $region2: #{tpu_custom_call.1} parent=1 // loop_pre_header
      _
    $region3: #{tpu_custom_call.1} parent=1 // loop_header
      %s18 = sphi 0, %s22
      %p19 = scmp.ge.s32.totalorder %s18, 4
      %s28 = sphi 0, %s30
      %s31 = sphi 0, %s28
      %s32 = sphi 0, %s31
      %s48 = sphi 0, %s32
      %s52 = sphi 0, %s52
      %s54 = sphi 0, %s52
      %s55 = sphi 0, %s54
      %s69 = sphi 0, %s55
      %s73 = sphi 0, %s73
      %s75 = sphi 0, %s73
      %s76 = sphi 0, %s75
      %s90 = sphi 0, %s76
      %s94 = sphi 0, %s94
      %s96 = sphi 0, %s94
      %s97 = sphi 0, %s96
      %s111 = sphi 0, %s97
      %s115 = sphi 0, %s115
      %s117 = sphi 0, %s115
      %s118 = sphi 0, %s117
      %s132 = sphi 0, %s118
      %s136 = sphi 0, %s136
      %s138 = sphi 0, %s136
      %s139 = sphi 0, %s138
      %s153 = sphi 0, %s139
      %s157 = sphi 0, %s157
      %s159 = sphi 0, %s157
      %s160 = sphi 0, %s159
      %s174 = sphi 0, %s160
      %s180 = sphi 0, %s182
      %s183 = sphi 0, %s180
      %s184 = sphi 0, %s183
      %s200 = sphi 0, %s184
    $region4: #{tpu_custom_call.1} parent=1 // loop_header_branch
      %21 = sbr.rel (%p19) target = $region8
    $region5: #{tpu_custom_call.1} parent=1 // loop_body
      %s23 = ssub.s32 %s18, 1
      %s24 = ssub.s32 %s18, 2
      %s25 = sadd.s32 %s18, 1
      %s26 = ssub.s32 %s18, %s25
      %p27 = scmp.eq.s32.totalorder %s26, 0
      %s29 = sadd.s32 %s28, 1
      %s30 = scalar_select %p27, %s28, %s29
      %p33 = pneg %p27
      %p34 = scmp.eq.s32.totalorder %s18, 1
      %p35 = por %p33, %p34
      %p36 = scmp.ne.s32.totalorder %s28, %s31
      %p37 = scmp.eq.s32.totalorder %s18, 0
      %p38 = por %p36, %p37
      %p39 = scmp.ne.s32.totalorder %s28, %s31
      %p40 = scmp.eq.s32.totalorder %s23, 1
      %p41 = por %p39, %p40
      %p42 = scmp.ne.s32.totalorder %s31, %s32
      %p43 = scmp.eq.s32.totalorder %s23, 0
      %p44 = por %p42, %p43
      %p45 = scmp.ne.s32.totalorder %s31, %s32
      %p46 = scmp.eq.s32.totalorder %s24, 1
      %p47 = por %p45, %p46
      %p49 = scmp.ne.s32.totalorder %s32, %s48
      %p50 = scmp.eq.s32.totalorder %s24, 0
      %p51 = por %p49, %p50
      %s53 = sadd.s32 %s52, 1
      %p56 = scmp.eq.s32.totalorder %s18, 1
      %p57 = scmp.ne.s32.totalorder %s52, %s54
      %p58 = scmp.eq.s32.totalorder %s18, 0
      %p59 = por %p57, %p58
      %p60 = scmp.ne.s32.totalorder %s52, %s54
      %p61 = scmp.eq.s32.totalorder %s23, 1
      %p62 = por %p60, %p61
      %p63 = scmp.ne.s32.totalorder %s54, %s55
      %p64 = scmp.eq.s32.totalorder %s23, 0
      %p65 = por %p63, %p64
      %p66 = scmp.ne.s32.totalorder %s54, %s55
      %p67 = scmp.eq.s32.totalorder %s24, 1
      %p68 = por %p66, %p67
      %p70 = scmp.ne.s32.totalorder %s55, %s69
      %p71 = scmp.eq.s32.totalorder %s24, 0
      %p72 = por %p70, %p71
      %s74 = sadd.s32 %s73, 1
      %p77 = scmp.eq.s32.totalorder %s18, 1
      %p78 = scmp.ne.s32.totalorder %s73, %s75
      %p79 = scmp.eq.s32.totalorder %s18, 0
      %p80 = por %p78, %p79
      %p81 = scmp.ne.s32.totalorder %s73, %s75
      %p82 = scmp.eq.s32.totalorder %s23, 1
      %p83 = por %p81, %p82
      %p84 = scmp.ne.s32.totalorder %s75, %s76
      %p85 = scmp.eq.s32.totalorder %s23, 0
      %p86 = por %p84, %p85
      %p87 = scmp.ne.s32.totalorder %s75, %s76
      %p88 = scmp.eq.s32.totalorder %s24, 1
      %p89 = por %p87, %p88
      %p91 = scmp.ne.s32.totalorder %s76, %s90
      %p92 = scmp.eq.s32.totalorder %s24, 0
      %p93 = por %p91, %p92
      %s95 = sadd.s32 %s94, 1
      %p98 = scmp.eq.s32.totalorder %s18, 1
      %p99 = scmp.ne.s32.totalorder %s94, %s96
      %p100 = scmp.eq.s32.totalorder %s18, 0
      %p101 = por %p99, %p100
      %p102 = scmp.ne.s32.totalorder %s94, %s96
      %p103 = scmp.eq.s32.totalorder %s23, 1
      %p104 = por %p102, %p103
      %p105 = scmp.ne.s32.totalorder %s96, %s97
      %p106 = scmp.eq.s32.totalorder %s23, 0
      %p107 = por %p105, %p106
      %p108 = scmp.ne.s32.totalorder %s96, %s97
      %p109 = scmp.eq.s32.totalorder %s24, 1
      %p110 = por %p108, %p109
      %p112 = scmp.ne.s32.totalorder %s97, %s111
      %p113 = scmp.eq.s32.totalorder %s24, 0
      %p114 = por %p112, %p113
      %s116 = sadd.s32 %s115, 1
      %p119 = scmp.eq.s32.totalorder %s18, 1
      %p120 = scmp.ne.s32.totalorder %s115, %s117
      %p121 = scmp.eq.s32.totalorder %s18, 0
      %p122 = por %p120, %p121
      %p123 = scmp.ne.s32.totalorder %s115, %s117
      %p124 = scmp.eq.s32.totalorder %s23, 1
      %p125 = por %p123, %p124
      %p126 = scmp.ne.s32.totalorder %s117, %s118
      %p127 = scmp.eq.s32.totalorder %s23, 0
      %p128 = por %p126, %p127
      %p129 = scmp.ne.s32.totalorder %s117, %s118
      %p130 = scmp.eq.s32.totalorder %s24, 1
      %p131 = por %p129, %p130
      %p133 = scmp.ne.s32.totalorder %s118, %s132
      %p134 = scmp.eq.s32.totalorder %s24, 0
      %p135 = por %p133, %p134
      %s137 = sadd.s32 %s136, 1
      %p140 = scmp.eq.s32.totalorder %s18, 1
      %p141 = scmp.ne.s32.totalorder %s136, %s138
      %p142 = scmp.eq.s32.totalorder %s18, 0
      %p143 = por %p141, %p142
      %p144 = scmp.ne.s32.totalorder %s136, %s138
      %p145 = scmp.eq.s32.totalorder %s23, 1
      %p146 = por %p144, %p145
      %p147 = scmp.ne.s32.totalorder %s138, %s139
      %p148 = scmp.eq.s32.totalorder %s23, 0
      %p149 = por %p147, %p148
      %p150 = scmp.ne.s32.totalorder %s138, %s139
      %p151 = scmp.eq.s32.totalorder %s24, 1
      %p152 = por %p150, %p151
      %p154 = scmp.ne.s32.totalorder %s139, %s153
      %p155 = scmp.eq.s32.totalorder %s24, 0
      %p156 = por %p154, %p155
      %s158 = sadd.s32 %s157, 1
      %p161 = scmp.eq.s32.totalorder %s18, 1
      %p162 = scmp.ne.s32.totalorder %s157, %s159
      %p163 = scmp.eq.s32.totalorder %s18, 0
      %p164 = por %p162, %p163
      %p165 = scmp.ne.s32.totalorder %s157, %s159
      %p166 = scmp.eq.s32.totalorder %s23, 1
      %p167 = por %p165, %p166
      %p168 = scmp.ne.s32.totalorder %s159, %s160
      %p169 = scmp.eq.s32.totalorder %s23, 0
      %p170 = por %p168, %p169
      %p171 = scmp.ne.s32.totalorder %s159, %s160
      %p172 = scmp.eq.s32.totalorder %s24, 1
      %p173 = por %p171, %p172
      %p175 = scmp.ne.s32.totalorder %s160, %s174
      %p176 = scmp.eq.s32.totalorder %s24, 0
      %p177 = por %p175, %p176
      %s178 = ssub.s32 %s18, %s25
      %p179 = scmp.eq.s32.totalorder %s178, 0
      %s181 = sadd.s32 %s180, 1
      %s182 = scalar_select %p179, %s180, %s181
      %p185 = pneg %p179
      %p186 = scmp.eq.s32.totalorder %s18, 1
      %p187 = por %p185, %p186
      %p188 = scmp.ne.s32.totalorder %s180, %s183
      %p189 = scmp.eq.s32.totalorder %s18, 0
      %p190 = por %p188, %p189
      %p191 = scmp.ne.s32.totalorder %s180, %s183
      %p192 = scmp.eq.s32.totalorder %s23, 1
      %p193 = por %p191, %p192
      %p194 = scmp.ne.s32.totalorder %s183, %s184
      %p195 = scmp.eq.s32.totalorder %s23, 0
      %p196 = por %p194, %p195
      %p197 = scmp.ne.s32.totalorder %s183, %s184
      %p198 = scmp.eq.s32.totalorder %s24, 1
      %p199 = por %p197, %p198
      %p201 = scmp.ne.s32.totalorder %s184, %s200
      %p202 = scmp.eq.s32.totalorder %s24, 0
      %p203 = por %p201, %p202
      %p204 = scmp.le.s32.totalorder 1, %s18
      %p205 = scmp.lt.s32.totalorder %s18, 3
      %p206 = pnand %p204, %p205
      %p207 = pneg %p206
      // Predicated region
      $region9: #{tpu_custom_call.1} parent=5 // pred_check
        _
      $region10: #{tpu_custom_call.1} parent=5 // pred_check_branch
        %209 = sbr.rel (%p206) target = $region12
      $region11: #{tpu_custom_call.1} parent=5 // pred_region
        %s210 = ssub.s32 %s18, 1
        // Predicated region
        $region13: #{tpu_custom_call.1} parent=11 // pred_check
          %p211 = pneg %p65
        $region14: #{tpu_custom_call.1} parent=11 // pred_check_branch
          %213 = sbr.rel (%p211) target = $region16
        $region15: #{tpu_custom_call.1} parent=11 // pred_region
          _
        $region16: #{tpu_custom_call.1} parent=11 // pred_fallthru
          _
        // Predicated region
        $region17: #{tpu_custom_call.1} parent=11 // pred_check
          %p214 = pneg %p86
        $region18: #{tpu_custom_call.1} parent=11 // pred_check_branch
          %216 = sbr.rel (%p214) target = $region20
        $region19: #{tpu_custom_call.1} parent=11 // pred_region
          _
        $region20: #{tpu_custom_call.1} parent=11 // pred_fallthru
          _
        // Predicated region
        $region21: #{tpu_custom_call.1} parent=11 // pred_check
          %p217 = pneg %p107
        $region22: #{tpu_custom_call.1} parent=11 // pred_check_branch
          %219 = sbr.rel (%p217) target = $region24
        $region23: #{tpu_custom_call.1} parent=11 // pred_region
          %s221 = ssub.s32 2048, 2048
          %222 = vsyncadd [#allocation3], %s221
          %s223 = sshll.u32 [#allocation2], 4
          %s224 = int_to_ptr.vmem [resolvable:$true] %s223
          %229 = dma.hbm_to_vmem [thread:$0]  %s3, 2048, %s224, [#allocation3], 128, 128, 8
        $region24: #{tpu_custom_call.1} parent=11 // pred_fallthru
          _
        // Predicated region
        $region25: #{tpu_custom_call.1} parent=11 // pred_check
          %p230 = pneg %p128
        $region26: #{tpu_custom_call.1} parent=11 // pred_check_branch
          %232 = sbr.rel (%p230) target = $region28
        $region27: #{tpu_custom_call.1} parent=11 // pred_region
          _
        $region28: #{tpu_custom_call.1} parent=11 // pred_fallthru
          _
        // Predicated region
        $region29: #{tpu_custom_call.1} parent=11 // pred_check
          %p233 = pneg %p149
        $region30: #{tpu_custom_call.1} parent=11 // pred_check_branch
          %235 = sbr.rel (%p233) target = $region32
        $region31: #{tpu_custom_call.1} parent=11 // pred_region
          %s237 = ssub.s32 2048, 2048
          %238 = vsyncadd [#allocation6], %s237
          %s239 = sshll.u32 [#allocation5], 4
          %s240 = int_to_ptr.vmem [resolvable:$true] %s239
          %245 = dma.hbm_to_vmem [thread:$0]  %s5, 2048, %s240, [#allocation6], 128, 128, 8
        $region32: #{tpu_custom_call.1} parent=11 // pred_fallthru
          _
        // Predicated region
        $region33: #{tpu_custom_call.1} parent=11 // pred_check
          %p246 = pneg %p170
        $region34: #{tpu_custom_call.1} parent=11 // pred_check_branch
          %248 = sbr.rel (%p246) target = $region36
        $region35: #{tpu_custom_call.1} parent=11 // pred_region
          _
        $region36: #{tpu_custom_call.1} parent=11 // pred_fallthru
          _
      $region12: #{tpu_custom_call.1} parent=5 // pred_fallthru
        _
      %p249 = scmp.lt.s32.totalorder %s18, 2
      // Predicated region
      $region37: #{tpu_custom_call.1} parent=5 // pred_check
        %p250 = pneg %p249
      $region38: #{tpu_custom_call.1} parent=5 // pred_check_branch
        %252 = sbr.rel (%p250) target = $region40
      $region39: #{tpu_custom_call.1} parent=5 // pred_region
        // Predicated region
        $region41: #{tpu_custom_call.1} parent=39 // pred_check
          %p253 = pneg %p38
        $region42: #{tpu_custom_call.1} parent=39 // pred_check_branch
          %255 = sbr.rel (%p253) target = $region44
        $region43: #{tpu_custom_call.1} parent=39 // pred_region
          %s256 = smul.u32 4, %s18
          %p257 = scmp.lt.s32.totalorder %s256, 7
          %s258 = scalar_select %p257, %s256, 7
          %s259 = smul.addr %s258, 8
          %s260 = scalar_lea.vmem %s0, %s259
          %s261 = smul.u32 4, %s18
        $region44: #{tpu_custom_call.1} parent=39 // pred_fallthru
          _
      $region40: #{tpu_custom_call.1} parent=5 // pred_fallthru
        _
      %p262 = scmp.le.s32.totalorder 1, %s18
      %p263 = scmp.lt.s32.totalorder %s18, 3
      %p264 = pnand %p262, %p263
      %p265 = pneg %p264
      // Predicated region
      $region45: #{tpu_custom_call.1} parent=5 // pred_check
        _
      $region46: #{tpu_custom_call.1} parent=5 // pred_check_branch
        %267 = sbr.rel (%p264) target = $region48
      $region47: #{tpu_custom_call.1} parent=5 // pred_region
        %s268 = ssub.s32 %s18, 1
        // Predicated region
        $region49: #{tpu_custom_call.1} parent=47 // pred_check
          %p269 = pneg %p107
        $region50: #{tpu_custom_call.1} parent=47 // pred_check_branch
          %271 = sbr.rel (%p269) target = $region52
        $region51: #{tpu_custom_call.1} parent=47 // pred_region
          %272 = dma.done [#allocation3], 2048
        $region52: #{tpu_custom_call.1} parent=47 // pred_fallthru
          _
        // Predicated region
        $region53: #{tpu_custom_call.1} parent=47 // pred_check
          %p273 = pneg %p149
        $region54: #{tpu_custom_call.1} parent=47 // pred_check_branch
          %275 = sbr.rel (%p273) target = $region56
        $region55: #{tpu_custom_call.1} parent=47 // pred_region
          %276 = dma.done [#allocation6], 2048
        $region56: #{tpu_custom_call.1} parent=47 // pred_fallthru
          _
        %s277 = smul.u32 4, %s23
        %p278 = scmp.lt.s32.totalorder %s277, 7
        %s279 = scalar_select %p278, %s277, 7
        %s280 = smul.addr %s279, 8
        %s281 = scalar_lea.vmem %s0, %s280
        %p282 = pneg %p44
        %p283 = pneg %p41
        %p284 = pneg %p65
        %p285 = pneg %p62
        %p286 = pneg %p86
        %p287 = pneg %p83
        %p288 = pneg %p107
        %p289 = pneg %p104
        %p290 = pneg %p128
        %p291 = pneg %p125
        %p292 = pneg %p149
        %p293 = pneg %p146
        %p294 = pneg %p170
        %p295 = pneg %p167
        %p296 = pneg %p196
        %p297 = pneg %p193
        %s298 = sand.u32 %s183, 1
        %s299 = scalar_lea.sflag [#allocation4], %s298
        %s300 = sand.u32 %s183, 1
        %s301 = smul.addr %s300, 32
        %s302 = scalar_lea.vmem [#allocation7], %s301
        %s303 = smul.u32 4, %s23
        %p304 = scmp.lt.s32.totalorder %s303, 7
        %s305 = scalar_select %p304, %s303, 7
        %s306 = smul.addr %s305, 8
        %s307 = scalar_lea.vmem %s0, %s306
        %s308 = smul.u32 4, %s23
        %s309 = smul.u32 4, %s23
        %v310 = vld [vmem:[%s307] sm:$0xff]
        %v311 = vld [vmem:[%s307 + $0x8] sm:$0xff]
        %v312 = vld [vmem:[%s307 + $0x10] sm:$0xff]
        %v313 = vld [vmem:[%s307 + $0x18] sm:$0xff]
        %v314 = vld [vmem:[%s1] sm:$0xff]
        %v315 = vld [vmem:[%s1 + $0x8] sm:$0xff]
        %v316 = vld [vmem:[%s2] sm:$0x1]
        %v318 = vlaneseq
        %v319 = vshrl.u32 %v318, 7
        %v320 = vsub.s32 0, %v319
        %v321 = vrot.slane %v316, %v320
        %vm323 = vcmask 130048
        %v325 = vsel %vm323, %v310, 0
        %v328 = vsel %vm323, %v311, 0
        %v331 = vsel %vm323, %v312, 0
        %v334 = vsel %vm323, %v313, 0
        %336 = vmatprep.subr.mxu0 0.0
        %337 = vmatpush1.msra.mxu0 %v314
        %338 = vmatprep.subr.mxu0 0.0
        %339 = vmatpush1.msra.mxu0 %v315
        %340 = vmatprep.subr.mxu0 0.0
        %341 = vmatpush1.msra.mxu0 0.0
        %342 = vmatprep.subr.mxu0 0.0
        %343 = vmatpush1.msra.mxu0 0.0
        %344 = vmatprep.subr.mxu0 0.0
        %345 = vmatpush1.msra.mxu0 0.0
        %346 = vmatprep.subr.mxu0 0.0
        %347 = vmatpush1.msra.mxu0 0.0
        %348 = vmatprep.subr.mxu0 0.0
        %349 = vmatpush1.msra.mxu0 0.0
        %350 = vmatprep.subr.mxu0 0.0
        %351 = vmatpush1.msra.mxu0 0.0
        %352 = vmatprep.subr.mxu0 0.0
        %353 = vmatpush1.msra.mxu0 0.0
        %354 = vmatprep.subr.mxu0 0.0
        %355 = vmatpush1.msra.mxu0 0.0
        %356 = vmatprep.subr.mxu0 0.0
        %357 = vmatpush1.msra.mxu0 0.0
        %358 = vmatprep.subr.mxu0 0.0
        %359 = vmatpush1.msra.mxu0 0.0
        %360 = vmatprep.subr.mxu0 0.0
        %361 = vmatpush1.msra.mxu0 0.0
        %362 = vmatprep.subr.mxu0 0.0
        %363 = vmatpush1.msra.mxu0 0.0
        %364 = vmatprep.subr.mxu0 0.0
        %365 = vmatpush1.msra.mxu0 0.0
        %366 = vmatprep.subr.mxu0 0.0
        %367 = vmatpush1.msra.mxu0 0.0
        %368 = vmatprep.subr.mxu0 0.0
        %369 = vmatpush1.msra.mxu0 0.0
        %370 = vmatprep.subr.mxu0 0.0
        %371 = vmatpush1.msra.mxu0 0.0
        %372 = vmatprep.subr.mxu0 0.0
        %373 = vmatpush1.msra.mxu0 0.0
        %374 = vmatprep.subr.mxu0 0.0
        %375 = vmatpush1.msra.mxu0 0.0
        %376 = vmatprep.subr.mxu0 0.0
        %377 = vmatpush1.msra.mxu0 0.0
        %378 = vmatprep.subr.mxu0 0.0
        %379 = vmatpush1.msra.mxu0 0.0
        %380 = vmatprep.subr.mxu0 0.0
        %381 = vmatpush1.msra.mxu0 0.0
        %382 = vmatprep.subr.mxu0 0.0
        %383 = vmatpush1.msra.mxu0 0.0
        %384 = vmatprep.subr.mxu0 0.0
        %385 = vmatpush1.msra.mxu0 0.0
        %386 = vmatprep.subr.mxu0 0.0
        %387 = vmatpush1.msra.mxu0 0.0
        %388 = vmatprep.subr.mxu0 0.0
        %389 = vmatpush1.msra.mxu0 0.0
        %390 = vmatprep.subr.mxu0 0.0
        %391 = vmatpush1.msra.mxu0 0.0
        %392 = vmatprep.subr.mxu0 0.0
        %393 = vmatpush1.msra.mxu0 0.0
        %394 = vmatprep.subr.mxu0 0.0
        %395 = vmatpush1.msra.mxu0 0.0
        %396 = vmatprep.subr.mxu0 0.0
        %397 = vmatpush1.msra.mxu0 0.0
        %398 = vmatprep.subr.mxu0 0.0
        %399 = vmatpush1.msra.mxu0 0.0
        %400 = vmatprep.mubr.f32.mxu0 0.0
        %401 = vmatmul.mubr.f32.gmra.mrb[0].mxu0 %v325
        %v402 = vpop.f32.mrb[0].mxu0
        %v403 = vadd.f32 %v321, %v402
        %v404 = vpop.f32.mrb[0].mxu0
        %405 = vmatprep.mubr.f32.mxu0 0.0
        %406 = vmatmul.mubr.f32.gmra.mrb[0].mxu0 %v328
        %v407 = vpop.f32.mrb[0].mxu0
        %v408 = vadd.f32 %v321, %v407
        %v409 = vpop.f32.mrb[0].mxu0
        %410 = vmatprep.mubr.f32.mxu0 0.0
        %411 = vmatmul.mubr.f32.gmra.mrb[0].mxu0 %v331
        %v412 = vpop.f32.mrb[0].mxu0
        %v413 = vadd.f32 %v321, %v412
        %v414 = vpop.f32.mrb[0].mxu0
        %415 = vmatprep.mubr.f32.mxu0 0.0
        %416 = vmatmul.mubr.f32.gmra.mrb[0].mxu0 %v334
        %v417 = vpop.f32.mrb[0].mxu0
        %v418 = vadd.f32 %v321, %v417
        %v419 = vpop.f32.mrb[0].mxu0
        %420 = vdwg.mxu0
        %v421 = vmax.f32 %v403, 0.0
        %v422 = vmax.f32 %v408, 0.0
        %v423 = vmax.f32 %v413, 0.0
        %v424 = vmax.f32 %v418, 0.0
        %v425 = vld [vmem:[#allocation2] sm:$0xff]
        %v426 = vld [vmem:[#allocation2 + $0x8] sm:$0xff]
        %v427 = vld [vmem:[#allocation2 + $0x10] sm:$0xff]
        %v428 = vld [vmem:[#allocation2 + $0x18] sm:$0xff]
        %v429 = vld [vmem:[#allocation2 + $0x20] sm:$0xff]
        %v430 = vld [vmem:[#allocation2 + $0x28] sm:$0xff]
        %v431 = vld [vmem:[#allocation2 + $0x30] sm:$0xff]
        %v432 = vld [vmem:[#allocation2 + $0x38] sm:$0xff]
        %v433 = vld [vmem:[#allocation2 + $0x40] sm:$0xff]
        %v434 = vld [vmem:[#allocation2 + $0x48] sm:$0xff]
        %v435 = vld [vmem:[#allocation2 + $0x50] sm:$0xff]
        %v436 = vld [vmem:[#allocation2 + $0x58] sm:$0xff]
        %v437 = vld [vmem:[#allocation2 + $0x60] sm:$0xff]
        %v438 = vld [vmem:[#allocation2 + $0x68] sm:$0xff]
        %v439 = vld [vmem:[#allocation2 + $0x70] sm:$0xff]
        %v440 = vld [vmem:[#allocation2 + $0x78] sm:$0xff]
        %v441 = vld [vmem:[%s4] sm:$0x1]
        %v443 = vlaneseq
        %v444 = vshrl.u32 %v443, 7
        %v445 = vsub.s32 0, %v444
        %v446 = vrot.slane %v441, %v445
        %448 = vmatprep.subr.mxu0 0.0
        %449 = vmatpush1.msra.mxu0 %v425
        %450 = vmatprep.subr.mxu0 0.0
        %451 = vmatpush1.msra.mxu0 %v426
        %452 = vmatprep.subr.mxu0 0.0
        %453 = vmatpush1.msra.mxu0 %v427
        %454 = vmatprep.subr.mxu0 0.0
        %455 = vmatpush1.msra.mxu0 %v428
        %456 = vmatprep.subr.mxu0 0.0
        %457 = vmatpush1.msra.mxu0 %v429
        %458 = vmatprep.subr.mxu0 0.0
        %459 = vmatpush1.msra.mxu0 %v430
        %460 = vmatprep.subr.mxu0 0.0
        %461 = vmatpush1.msra.mxu0 %v431
        %462 = vmatprep.subr.mxu0 0.0
        %463 = vmatpush1.msra.mxu0 %v432
        %464 = vmatprep.subr.mxu0 0.0
        %465 = vmatpush1.msra.mxu0 %v433
        %466 = vmatprep.subr.mxu0 0.0
        %467 = vmatpush1.msra.mxu0 %v434
        %468 = vmatprep.subr.mxu0 0.0
        %469 = vmatpush1.msra.mxu0 %v435
        %470 = vmatprep.subr.mxu0 0.0
        %471 = vmatpush1.msra.mxu0 %v436
        %472 = vmatprep.subr.mxu0 0.0
        %473 = vmatpush1.msra.mxu0 %v437
        %474 = vmatprep.subr.mxu0 0.0
        %475 = vmatpush1.msra.mxu0 %v438
        %476 = vmatprep.subr.mxu0 0.0
        %477 = vmatpush1.msra.mxu0 %v439
        %478 = vmatprep.subr.mxu0 0.0
        %479 = vmatpush1.msra.mxu0 %v440
        %480 = vmatprep.subr.mxu0 0.0
        %481 = vmatpush1.msra.mxu0 0.0
        %482 = vmatprep.subr.mxu0 0.0
        %483 = vmatpush1.msra.mxu0 0.0
        %484 = vmatprep.subr.mxu0 0.0
        %485 = vmatpush1.msra.mxu0 0.0
        %486 = vmatprep.subr.mxu0 0.0
        %487 = vmatpush1.msra.mxu0 0.0
        %488 = vmatprep.subr.mxu0 0.0
        %489 = vmatpush1.msra.mxu0 0.0
        %490 = vmatprep.subr.mxu0 0.0
        %491 = vmatpush1.msra.mxu0 0.0
        %492 = vmatprep.subr.mxu0 0.0
        %493 = vmatpush1.msra.mxu0 0.0
        %494 = vmatprep.subr.mxu0 0.0
        %495 = vmatpush1.msra.mxu0 0.0
        %496 = vmatprep.subr.mxu0 0.0
        %497 = vmatpush1.msra.mxu0 0.0
        %498 = vmatprep.subr.mxu0 0.0
        %499 = vmatpush1.msra.mxu0 0.0
        %500 = vmatprep.subr.mxu0 0.0
        %501 = vmatpush1.msra.mxu0 0.0
        %502 = vmatprep.subr.mxu0 0.0
        %503 = vmatpush1.msra.mxu0 0.0
        %504 = vmatprep.subr.mxu0 0.0
        %505 = vmatpush1.msra.mxu0 0.0
        %506 = vmatprep.subr.mxu0 0.0
        %507 = vmatpush1.msra.mxu0 0.0
        %508 = vmatprep.subr.mxu0 0.0
        %509 = vmatpush1.msra.mxu0 0.0
        %510 = vmatprep.subr.mxu0 0.0
        %511 = vmatpush1.msra.mxu0 0.0
        %512 = vmatprep.mubr.f32.mxu0 0.0
        %513 = vmatmul.mubr.f32.gmra.mrb[0].mxu0 %v421
        %v514 = vpop.f32.mrb[0].mxu0
        %v515 = vadd.f32 %v446, %v514
        %v516 = vpop.f32.mrb[0].mxu0
        %517 = vmatprep.mubr.f32.mxu0 0.0
        %518 = vmatmul.mubr.f32.gmra.mrb[0].mxu0 %v422
        %v519 = vpop.f32.mrb[0].mxu0
        %v520 = vadd.f32 %v446, %v519
        %v521 = vpop.f32.mrb[0].mxu0
        %522 = vmatprep.mubr.f32.mxu0 0.0
        %523 = vmatmul.mubr.f32.gmra.mrb[0].mxu0 %v423
        %v524 = vpop.f32.mrb[0].mxu0
        %v525 = vadd.f32 %v446, %v524
        %v526 = vpop.f32.mrb[0].mxu0
        %527 = vmatprep.mubr.f32.mxu0 0.0
        %528 = vmatmul.mubr.f32.gmra.mrb[0].mxu0 %v424
        %v529 = vpop.f32.mrb[0].mxu0
        %v530 = vadd.f32 %v446, %v529
        %v531 = vpop.f32.mrb[0].mxu0
        %532 = vdwg.mxu0
        %v533 = vmax.f32 %v515, 0.0
        %v534 = vmax.f32 %v520, 0.0
        %v535 = vmax.f32 %v525, 0.0
        %v536 = vmax.f32 %v530, 0.0
        %v537 = vld [vmem:[#allocation5] sm:$0xff]
        %v538 = vld [vmem:[#allocation5 + $0x8] sm:$0xff]
        %v539 = vld [vmem:[#allocation5 + $0x10] sm:$0xff]
        %v540 = vld [vmem:[#allocation5 + $0x18] sm:$0xff]
        %v541 = vld [vmem:[#allocation5 + $0x20] sm:$0xff]
        %v542 = vld [vmem:[#allocation5 + $0x28] sm:$0xff]
        %v543 = vld [vmem:[#allocation5 + $0x30] sm:$0xff]
        %v544 = vld [vmem:[#allocation5 + $0x38] sm:$0xff]
        %v545 = vld [vmem:[#allocation5 + $0x40] sm:$0xff]
        %v546 = vld [vmem:[#allocation5 + $0x48] sm:$0xff]
        %v547 = vld [vmem:[#allocation5 + $0x50] sm:$0xff]
        %v548 = vld [vmem:[#allocation5 + $0x58] sm:$0xff]
        %v549 = vld [vmem:[#allocation5 + $0x60] sm:$0xff]
        %v550 = vld [vmem:[#allocation5 + $0x68] sm:$0xff]
        %v551 = vld [vmem:[#allocation5 + $0x70] sm:$0xff]
        %v552 = vld [vmem:[#allocation5 + $0x78] sm:$0xff]
        %v553 = vld [vmem:[%s6] sm:$0x1]
        %v555 = vlaneseq
        %v556 = vshrl.u32 %v555, 7
        %v557 = vsub.s32 0, %v556
        %v558 = vrot.slane %v553, %v557
        %560 = vmatprep.subr.mxu0 0.0
        %561 = vmatpush1.msra.mxu0 %v537
        %562 = vmatprep.subr.mxu0 0.0
        %563 = vmatpush1.msra.mxu0 %v538
        %564 = vmatprep.subr.mxu0 0.0
        %565 = vmatpush1.msra.mxu0 %v539
        %566 = vmatprep.subr.mxu0 0.0
        %567 = vmatpush1.msra.mxu0 %v540
        %568 = vmatprep.subr.mxu0 0.0
        %569 = vmatpush1.msra.mxu0 %v541
        %570 = vmatprep.subr.mxu0 0.0
        %571 = vmatpush1.msra.mxu0 %v542
        %572 = vmatprep.subr.mxu0 0.0
        %573 = vmatpush1.msra.mxu0 %v543
        %574 = vmatprep.subr.mxu0 0.0
        %575 = vmatpush1.msra.mxu0 %v544
        %576 = vmatprep.subr.mxu0 0.0
        %577 = vmatpush1.msra.mxu0 %v545
        %578 = vmatprep.subr.mxu0 0.0
        %579 = vmatpush1.msra.mxu0 %v546
        %580 = vmatprep.subr.mxu0 0.0
        %581 = vmatpush1.msra.mxu0 %v547
        %582 = vmatprep.subr.mxu0 0.0
        %583 = vmatpush1.msra.mxu0 %v548
        %584 = vmatprep.subr.mxu0 0.0
        %585 = vmatpush1.msra.mxu0 %v549
        %586 = vmatprep.subr.mxu0 0.0
        %587 = vmatpush1.msra.mxu0 %v550
        %588 = vmatprep.subr.mxu0 0.0
        %589 = vmatpush1.msra.mxu0 %v551
        %590 = vmatprep.subr.mxu0 0.0
        %591 = vmatpush1.msra.mxu0 %v552
        %592 = vmatprep.subr.mxu0 0.0
        %593 = vmatpush1.msra.mxu0 0.0
        %594 = vmatprep.subr.mxu0 0.0
        %595 = vmatpush1.msra.mxu0 0.0
        %596 = vmatprep.subr.mxu0 0.0
        %597 = vmatpush1.msra.mxu0 0.0
        %598 = vmatprep.subr.mxu0 0.0
        %599 = vmatpush1.msra.mxu0 0.0
        %600 = vmatprep.subr.mxu0 0.0
        %601 = vmatpush1.msra.mxu0 0.0
        %602 = vmatprep.subr.mxu0 0.0
        %603 = vmatpush1.msra.mxu0 0.0
        %604 = vmatprep.subr.mxu0 0.0
        %605 = vmatpush1.msra.mxu0 0.0
        %606 = vmatprep.subr.mxu0 0.0
        %607 = vmatpush1.msra.mxu0 0.0
        %608 = vmatprep.subr.mxu0 0.0
        %609 = vmatpush1.msra.mxu0 0.0
        %610 = vmatprep.subr.mxu0 0.0
        %611 = vmatpush1.msra.mxu0 0.0
        %612 = vmatprep.subr.mxu0 0.0
        %613 = vmatpush1.msra.mxu0 0.0
        %614 = vmatprep.subr.mxu0 0.0
        %615 = vmatpush1.msra.mxu0 0.0
        %616 = vmatprep.subr.mxu0 0.0
        %617 = vmatpush1.msra.mxu0 0.0
        %618 = vmatprep.subr.mxu0 0.0
        %619 = vmatpush1.msra.mxu0 0.0
        %620 = vmatprep.subr.mxu0 0.0
        %621 = vmatpush1.msra.mxu0 0.0
        %622 = vmatprep.subr.mxu0 0.0
        %623 = vmatpush1.msra.mxu0 0.0
        %624 = vmatprep.mubr.f32.mxu0 0.0
        %625 = vmatmul.mubr.f32.gmra.mrb[0].mxu0 %v533
        %v626 = vpop.f32.mrb[0].mxu0
        %v627 = vadd.f32 %v558, %v626
        %v628 = vpop.f32.mrb[0].mxu0
        %629 = vmatprep.mubr.f32.mxu0 0.0
        %630 = vmatmul.mubr.f32.gmra.mrb[0].mxu0 %v534
        %v631 = vpop.f32.mrb[0].mxu0
        %v632 = vadd.f32 %v558, %v631
        %v633 = vpop.f32.mrb[0].mxu0
        %634 = vmatprep.mubr.f32.mxu0 0.0
        %635 = vmatmul.mubr.f32.gmra.mrb[0].mxu0 %v535
        %v636 = vpop.f32.mrb[0].mxu0
        %v637 = vadd.f32 %v558, %v636
        %v638 = vpop.f32.mrb[0].mxu0
        %639 = vmatprep.mubr.f32.mxu0 0.0
        %640 = vmatmul.mubr.f32.gmra.mrb[0].mxu0 %v536
        %v641 = vpop.f32.mrb[0].mxu0
        %v642 = vadd.f32 %v558, %v641
        %v643 = vpop.f32.mrb[0].mxu0
        %644 = vdwg.mxu0
        %645 = vst [vmem:[%s302] sm:$0xff] %v627
        %646 = vst [vmem:[%s302 + $0x8] sm:$0xff] %v632
        %647 = vst [vmem:[%s302 + $0x10] sm:$0xff] %v637
        %648 = vst [vmem:[%s302 + $0x18] sm:$0xff] %v642
        %s649 = sand.u32 %s183, 1
        %s650 = scalar_lea.sflag [#allocation4], %s649
        %s651 = sand.u32 %s183, 1
        %s652 = smul.addr %s651, 32
        %s653 = scalar_lea.vmem [#allocation7], %s652
        // Predicated region
        $region57: #{tpu_custom_call.1} parent=47 // pred_check
          %p654 = pneg %p193
        $region58: #{tpu_custom_call.1} parent=47 // pred_check_branch
          %656 = sbr.rel (%p654) target = $region60
        $region59: #{tpu_custom_call.1} parent=47 // pred_region
          %s657 = smul.u32 4, %s23
          %s659 = ssub.s32 512, 512
          %660 = vsyncadd %s650, %s659
          %s661 = smul.addr %s657, 128
          %s662 = scalar_lea.hbm %s7, %s661
          %s663 = sshll.u32 %s653, 4
          %s664 = int_to_ptr.vmem [resolvable:$true] %s663
          %669 = dma.vmem_to_hbm [thread:$0]  %s664, 512, %s662, %s650, 128, 128, 8
        $region60: #{tpu_custom_call.1} parent=47 // pred_fallthru
          _
      $region48: #{tpu_custom_call.1} parent=5 // pred_fallthru
        _
      %p670 = scmp.le.s32.totalorder 2, %s18
      // Predicated region
      $region61: #{tpu_custom_call.1} parent=5 // pred_check
        %p671 = pneg %p670
      $region62: #{tpu_custom_call.1} parent=5 // pred_check_branch
        %673 = sbr.rel (%p671) target = $region64
      $region63: #{tpu_custom_call.1} parent=5 // pred_region
        %s674 = ssub.s32 %s18, 2
        // Predicated region
        $region65: #{tpu_custom_call.1} parent=63 // pred_check
          %p675 = pneg %p199
        $region66: #{tpu_custom_call.1} parent=63 // pred_check_branch
          %677 = sbr.rel (%p675) target = $region68
        $region67: #{tpu_custom_call.1} parent=63 // pred_region
          %s678 = sand.u32 %s184, 1
          %s679 = scalar_lea.sflag [#allocation4], %s678
          %s680 = sand.u32 %s184, 1
          %s681 = smul.addr %s680, 32
          %s682 = scalar_lea.vmem [#allocation7], %s681
          %683 = dma.done %s679, 512
        $region68: #{tpu_custom_call.1} parent=63 // pred_fallthru
          _
      $region64: #{tpu_custom_call.1} parent=5 // pred_fallthru
        _
    $region6: #{tpu_custom_call.1} parent=1 // loop_footer
      %s22 = sadd.s32 1, %s18
    $region7: #{tpu_custom_call.1} parent=1 // loop_footer_branch
      %17 = sbr.rel target = $region3
    $region8: #{tpu_custom_call.1} parent=1 // loop_exit
      _
    %684 = vsyncpa [#allocation3], 1
    %s685 = scalar_lea.sflag [#allocation3], 1
    %686 = vsyncpa %s685, 1
    %687 = vsyncpa [#allocation6], 1
    %688 = vsyncpa [#allocation4], 1
    %s689 = scalar_lea.sflag [#allocation4], 1
    %690 = vsyncpa %s689, 1

</llo_original>
